<compile_context>
chip_gen: v7x
topology: tpu7x:2x2x1
jax: 0.10.0
libtpu: 0.0.40
codegen_flags: <defaults>
</compile_context>

<pallas_src>
import math

import jax
import jax.numpy as jnp
from jax.experimental import pallas as pl
from jax.experimental.pallas import tpu as pltpu


def _mlp_kernel(x_ref, mu_ref, w1a_ref, w1b_ref, b1_ref,
                w2_ref, b2_ref, w3_ref, b3_ref, o_ref):
    # x_ref / mu_ref : (tm, F) folded activation tiles in the I/O dtype.
    # w*_ref         : (F, F) block-diagonal folded weights (compute dtype).
    # b*_ref         : (1, F) f32 biases (tiled along the fold).
    cdt = w2_ref.dtype
    x = x_ref[...].astype(cdt)          # in-kernel cast (hidden under DMA)
    mu = mu_ref[...].astype(cdt)

    h = jnp.dot(x, w1a_ref[...], preferred_element_type=jnp.float32)
    h = h + jnp.dot(mu, w1b_ref[...], preferred_element_type=jnp.float32)
    h = jnp.maximum(h + b1_ref[...], 0.0)          # bias + ReLU in f32

    h = jnp.dot(h.astype(cdt), w2_ref[...], preferred_element_type=jnp.float32)
    h = jnp.maximum(h + b2_ref[...], 0.0)

    h = jnp.dot(h.astype(cdt), w3_ref[...], preferred_element_type=jnp.float32)
    o_ref[...] = (h + b3_ref[...]).astype(o_ref.dtype)


def _cdiv(a, b):
    return -(-a // b)


def _round_up(a, b):
    return _cdiv(a, b) * b


def _sublane(dtype):
    # Minimum second-to-last tile: 8 for 4-byte, 16 for 2-byte, 32 for 1-byte.
    return 8 * (4 // jnp.dtype(dtype).itemsize)


def _target_lane():
    # 256-wide MXU on v6e / v7x; 128 elsewhere (and as a safe fallback).
    try:
        kind = jax.devices()[0].device_kind.lower()
    except Exception:
        return 128
    if ("v6" in kind) or ("v7" in kind) or ("7x" in kind) or ("trillium" in kind):
        return 256
    return 128


def _pick_fold(n_x, lane, max_f=512):
    """Fold factor so F = fold * n_x is lane-dense (multiple of 128, and of
    `lane` when that still fits the VMEM budget)."""
    if n_x > max_f:
        return 1
    f = math.lcm(n_x, 128)
    if f > max_f:
        return 1                       # fallback: no folding (masked stores)
    f_wide = math.lcm(n_x, lane)
    if f_wide <= max_f:
        f = f_wide
    return f // n_x


def _fold_weight(w, fold):
    # (k, n) -> block-diagonal (fold*k, fold*n); identity when fold == 1.
    if fold == 1:
        return w
    return jnp.kron(jnp.eye(fold, dtype=w.dtype), w)


def nn_dxdt_forward(x, mu, params, *, tm_target=512, compute_dtype=jnp.float32):
    """x, mu: (B, C, T, n_x). Returns (B, C, T, n_x) in x.dtype."""
    w1, b1, w2, b2, w3, b3 = params    # w* stored as (in_features, out_features)
    B, C, T, n_x = x.shape
    M = B * C * T
    io_dtype = x.dtype
    io_bytes = jnp.dtype(io_dtype).itemsize
    cdt_bytes = jnp.dtype(compute_dtype).itemsize

    # Lane folding: pack `fold` logical rows into one lane-dense row of width F.
    lane = _target_lane()
    fold = _pick_fold(n_x, lane)
    F = fold * n_x

    # Pad only to a multiple of fold*sublane (no-op -> zero extra HBM passes in
    # the common case).  Never round M up to tm * grid_n.
    sub = _sublane(io_dtype)
    M_pad = _round_up(M, fold * sub)
    m_fold = M_pad // fold

    # Row tiling: aim for >=8 grid steps when the work allows (pipeline overlap
    # and both v7x TensorCores), tm within [sub, tm_target]; tiny problems run
    # as a single step.  The last block may be partial; Pallas masks it.
    tm = _round_up(_cdiv(m_fold, 8), sub)
    tm = max(sub, min(tm, _round_up(tm_target, sub)))
    if m_fold <= 2 * sub:
        tm = m_fold
    tm = min(tm, m_fold)
    grid_n = _cdiv(m_fold, tm)

    def fold_act(a):                    # free row-major reshapes; dtype untouched
        a = a.reshape(M, n_x)
        if M_pad > M:
            a = jnp.pad(a, ((0, M_pad - M), (0, 0)))
        return a.reshape(m_fold, F)

    x_f = fold_act(x)
    mu_f = fold_act(mu)

    # Block-diagonal folded weights; W1 split into x / mu halves so the concat
    # never materializes.  Biases tiled along the fold, kept in f32.
    w1a = _fold_weight(w1[:n_x], fold).astype(compute_dtype)
    w1b = _fold_weight(w1[n_x:], fold).astype(compute_dtype)
    w2f = _fold_weight(w2, fold).astype(compute_dtype)
    w3f = _fold_weight(w3, fold).astype(compute_dtype)
    b1f = jnp.tile(b1.astype(jnp.float32), (1, fold))
    b2f = jnp.tile(b2.astype(jnp.float32), (1, fold))
    b3f = jnp.tile(b3.astype(jnp.float32), (1, fold))

    full = lambda i: (0, 0)             # grid-invariant: Pallas skips the re-DMA
    row = lambda i: (i, 0)

    # VMEM accounting: double-buffered activation tiles, (double-buffered)
    # constant weight/bias blocks, plus the live f32 intermediates.  Clamp well
    # under v7x's 64 MiB so the compiler keeps scratch headroom.
    weight_bytes = 4 * F * F * cdt_bytes + 3 * F * 4
    vmem_need = (2 * weight_bytes
                 + 2 * tm * F * 3 * io_bytes      # x, mu in + out tiles, x2 buffers
                 + 3 * tm * F * 4)                # f32 h accumulators / cast copies
    vmem_limit = int(min(48 << 20, max(32 << 20, vmem_need + (8 << 20))))

    cost = pl.CostEstimate(
        flops=8 * m_fold * F * F,                          # 4 MXU dots per row tile
        transcendentals=0,
        bytes_accessed=3 * m_fold * F * io_bytes + weight_bytes,
    )

    out_f = pl.pallas_call(
        _mlp_kernel,
        out_shape=jax.ShapeDtypeStruct((m_fold, F), io_dtype),
        grid_spec=pltpu.PrefetchScalarGridSpec(
            num_scalar_prefetch=0,
            grid=(grid_n,),
            in_specs=[
                pl.BlockSpec((tm, F), row),     # x tile (folded, I/O dtype)
                pl.BlockSpec((tm, F), row),     # mu tile (folded, I/O dtype)
                pl.BlockSpec((F, F), full),     # W1 x-half, block-diag
                pl.BlockSpec((F, F), full),     # W1 mu-half, block-diag
                pl.BlockSpec((1, F), full),     # b1 (f32)
                pl.BlockSpec((F, F), full),     # W2, block-diag
                pl.BlockSpec((1, F), full),     # b2
                pl.BlockSpec((F, F), full),     # W3, block-diag
                pl.BlockSpec((1, F), full),     # b3
            ],
            out_specs=pl.BlockSpec((tm, F), row),
        ),
        compiler_params=pltpu.CompilerParams(
            dimension_semantics=("parallel",),
            vmem_limit_bytes=vmem_limit,
        ),
        cost_estimate=cost,
    )(x_f, mu_f, w1a, w1b, b1f, w2f, b2f, w3f, b3f)

    out = out_f.reshape(M_pad, n_x)
    if M_pad > M:                       # slice only when padding actually happened
        out = out[:M]
    return out.reshape(B, C, T, n_x)


def init_params(key, n_x):
    """Deterministic init mirroring nn.Linear shapes.

    PyTorch nn.Linear(in, out) has weight (out, in), bias (out,) and computes
    y = x @ W.T + b; we store W.T directly as (in, out)."""
    ks = jax.random.split(key, 6)

    def uniform(k, shape, fan_in):
        bound = 1.0 / jnp.sqrt(jnp.float32(fan_in))
        return jax.random.uniform(k, shape, jnp.float32, -bound, bound)

    w1 = uniform(ks[0], (2 * n_x, n_x), 2 * n_x)   # Linear(2*n_x, n_x).weight.T
    b1 = uniform(ks[1], (1, n_x), 2 * n_x)
    w2 = uniform(ks[2], (n_x, n_x), n_x)           # Linear(n_x, n_x).weight.T
    b2 = uniform(ks[3], (1, n_x), n_x)
    w3 = uniform(ks[4], (n_x, n_x), n_x)           # Linear(n_x, n_x).weight.T
    b3 = uniform(ks[5], (1, n_x), n_x)
    return (w1, b1, w2, b2, w3, b3)


def reference_forward(x, mu, params):
    """Pure-JAX reference of the PyTorch forward."""
    w1, b1, w2, b2, w3, b3 = params
    temp = jnp.concatenate([x, mu], axis=3)
    h = jnp.maximum(temp @ w1 + b1[0], 0.0)
    h = jnp.maximum(h @ w2 + b2[0], 0.0)
    return h @ w3 + b3[0]


if __name__ == "__main__":
    key = jax.random.PRNGKey(0)
    k_x, k_mu, k_p, k_x2, k_mu2 = jax.random.split(key, 5)

    n_x = 32
    B, C, T = 2, 4, 8                 # x: (B, C, T, n_x); concat along dim=3
    x = jax.random.normal(k_x, (B, C, T, n_x), jnp.float32)
    mu = jax.random.normal(k_mu, (B, C, T, n_x), jnp.float32)
    params = init_params(k_p, n_x)

    ref = reference_forward(x, mu, params)

    # f32 end-to-end
    out = jax.block_until_ready(nn_dxdt_forward(x, mu, params))
    assert out.shape == (B, C, T, n_x)
    assert jnp.allclose(out, ref, atol=1e-4, rtol=1e-4)

    # bf16 weights/matmuls (f32 accumulation, bias/ReLU), f32 activations in HBM
    out_bf = jax.block_until_ready(
        nn_dxdt_forward(x, mu, params, compute_dtype=jnp.bfloat16))
    assert jnp.allclose(out_bf, ref, atol=5e-2, rtol=5e-2)

    # Full bf16 I/O path (bandwidth mode for v5e): bf16 in -> bf16 out.
    xb, mub = x.astype(jnp.bfloat16), mu.astype(jnp.bfloat16)
    out_b16 = jax.block_until_ready(
        nn_dxdt_forward(xb, mub, params, compute_dtype=jnp.bfloat16))
    ref_b16 = reference_forward(xb.astype(jnp.float32), mub.astype(jnp.float32), params)
    assert out_b16.dtype == jnp.bfloat16
    assert jnp.allclose(out_b16.astype(jnp.float32), ref_b16, atol=1e-1, rtol=1e-1)

    # Row count not divisible by the fold/tile -> exercises the minimal-pad
    # path and the (only-when-needed) output slice.
    B2, C2, T2 = 2, 3, 7
    x2 = jax.random.normal(k_x2, (B2, C2, T2, n_x), jnp.float32)
    mu2 = jax.random.normal(k_mu2, (B2, C2, T2, n_x), jnp.float32)
    out2 = jax.block_until_ready(nn_dxdt_forward(x2, mu2, params))
    ref2 = reference_forward(x2, mu2, params)
    assert out2.shape == (B2, C2, T2, n_x)
    assert jnp.allclose(out2, ref2, atol=1e-4, rtol=1e-4)

    print("KERNEL_OK")
</pallas_src>

<mosaic_0001>
module attributes {stable_mosaic.version = 11 : i64} {
  func.func @_mlp_kernel(%arg0: i32, %arg1: memref<16x128xf32, #tpu.memory_space<vmem>>, %arg2: memref<16x128xf32, #tpu.memory_space<vmem>>, %arg3: memref<128x128xf32, #tpu.memory_space<vmem>>, %arg4: memref<128x128xf32, #tpu.memory_space<vmem>>, %arg5: memref<1x128xf32, #tpu.memory_space<vmem>>, %arg6: memref<128x128xf32, #tpu.memory_space<vmem>>, %arg7: memref<1x128xf32, #tpu.memory_space<vmem>>, %arg8: memref<128x128xf32, #tpu.memory_space<vmem>>, %arg9: memref<1x128xf32, #tpu.memory_space<vmem>>, %arg10: memref<16x128xf32, #tpu.memory_space<vmem>>) attributes {dimension_semantics = [#tpu.dimension_semantics<parallel>], iteration_bounds = array<i64: 1>, scalar_prefetch = 0 : i64, scratch_operands = 0 : i64, tpu.core_type = #tpu.core_type<tc>, window_params = [{transform_indices = @transform_0, window_bounds = array<i64: 16, 128>}, {transform_indices = @transform_1, window_bounds = array<i64: 16, 128>}, {pipeline_mode = #tpu.pipeline_mode<synchronous>, transform_indices = @transform_2, window_bounds = array<i64: 128, 128>}, {pipeline_mode = #tpu.pipeline_mode<synchronous>, transform_indices = @transform_3, window_bounds = array<i64: 128, 128>}, {pipeline_mode = #tpu.pipeline_mode<synchronous>, transform_indices = @transform_4, window_bounds = array<i64: 1, 128>}, {pipeline_mode = #tpu.pipeline_mode<synchronous>, transform_indices = @transform_5, window_bounds = array<i64: 128, 128>}, {pipeline_mode = #tpu.pipeline_mode<synchronous>, transform_indices = @transform_6, window_bounds = array<i64: 1, 128>}, {pipeline_mode = #tpu.pipeline_mode<synchronous>, transform_indices = @transform_7, window_bounds = array<i64: 128, 128>}, {pipeline_mode = #tpu.pipeline_mode<synchronous>, transform_indices = @transform_8, window_bounds = array<i64: 1, 128>}, {transform_indices = @transform_9, window_bounds = array<i64: 16, 128>}]} {
    %c0 = arith.constant 0 : index
    %c0_0 = arith.constant 0 : index
    %0 = vector.load %arg1[%c0, %c0_0] : memref<16x128xf32, #tpu.memory_space<vmem>>, vector<16x128xf32>
    %c0_1 = arith.constant 0 : index
    %c0_2 = arith.constant 0 : index
    %1 = vector.load %arg2[%c0_1, %c0_2] : memref<16x128xf32, #tpu.memory_space<vmem>>, vector<16x128xf32>
    %c0_3 = arith.constant 0 : index
    %c0_4 = arith.constant 0 : index
    %2 = vector.load %arg3[%c0_3, %c0_4] : memref<128x128xf32, #tpu.memory_space<vmem>>, vector<128x128xf32>
    %cst = arith.constant dense<0.000000e+00> : vector<16x128xf32>
    %3 = tpu.matmul %0, %2, %cst {dimension_numbers = #tpu.dot_dimension_numbers<[1], [0], [0], [1], [0, 0, 1, 1], [], []>} : vector<16x128xf32>, vector<128x128xf32>, vector<16x128xf32> -> vector<16x128xf32>
    %c0_5 = arith.constant 0 : index
    %c0_6 = arith.constant 0 : index
    %4 = vector.load %arg4[%c0_5, %c0_6] : memref<128x128xf32, #tpu.memory_space<vmem>>, vector<128x128xf32>
    %cst_7 = arith.constant dense<0.000000e+00> : vector<16x128xf32>
    %5 = tpu.matmul %1, %4, %cst_7 {dimension_numbers = #tpu.dot_dimension_numbers<[1], [0], [0], [1], [0, 0, 1, 1], [], []>} : vector<16x128xf32>, vector<128x128xf32>, vector<16x128xf32> -> vector<16x128xf32>
    %6 = arith.addf %3, %5 : vector<16x128xf32>
    %c0_8 = arith.constant 0 : index
    %c0_9 = arith.constant 0 : index
    %7 = vector.load %arg5[%c0_8, %c0_9] : memref<1x128xf32, #tpu.memory_space<vmem>>, vector<1x128xf32>
    %8 = vector.broadcast %7 : vector<1x128xf32> to vector<16x128xf32>
    %9 = arith.addf %6, %8 : vector<16x128xf32>
    %cst_10 = arith.constant 0.000000e+00 : f32
    %10 = vector.broadcast %cst_10 : f32 to vector<16x128xf32>
    %11 = arith.maximumf %9, %10 : vector<16x128xf32>
    %c0_11 = arith.constant 0 : index
    %c0_12 = arith.constant 0 : index
    %12 = vector.load %arg6[%c0_11, %c0_12] : memref<128x128xf32, #tpu.memory_space<vmem>>, vector<128x128xf32>
    %cst_13 = arith.constant dense<0.000000e+00> : vector<16x128xf32>
    %13 = tpu.matmul %11, %12, %cst_13 {dimension_numbers = #tpu.dot_dimension_numbers<[1], [0], [0], [1], [0, 0, 1, 1], [], []>} : vector<16x128xf32>, vector<128x128xf32>, vector<16x128xf32> -> vector<16x128xf32>
    %c0_14 = arith.constant 0 : index
    %c0_15 = arith.constant 0 : index
    %14 = vector.load %arg7[%c0_14, %c0_15] : memref<1x128xf32, #tpu.memory_space<vmem>>, vector<1x128xf32>
    %15 = vector.broadcast %14 : vector<1x128xf32> to vector<16x128xf32>
    %16 = arith.addf %13, %15 : vector<16x128xf32>
    %cst_16 = arith.constant 0.000000e+00 : f32
    %17 = vector.broadcast %cst_16 : f32 to vector<16x128xf32>
    %18 = arith.maximumf %16, %17 : vector<16x128xf32>
    %c0_17 = arith.constant 0 : index
    %c0_18 = arith.constant 0 : index
    %19 = vector.load %arg8[%c0_17, %c0_18] : memref<128x128xf32, #tpu.memory_space<vmem>>, vector<128x128xf32>
    %cst_19 = arith.constant dense<0.000000e+00> : vector<16x128xf32>
    %20 = tpu.matmul %18, %19, %cst_19 {dimension_numbers = #tpu.dot_dimension_numbers<[1], [0], [0], [1], [0, 0, 1, 1], [], []>} : vector<16x128xf32>, vector<128x128xf32>, vector<16x128xf32> -> vector<16x128xf32>
    %c0_20 = arith.constant 0 : index
    %c0_21 = arith.constant 0 : index
    %21 = vector.load %arg9[%c0_20, %c0_21] : memref<1x128xf32, #tpu.memory_space<vmem>>, vector<1x128xf32>
    %22 = vector.broadcast %21 : vector<1x128xf32> to vector<16x128xf32>
    %23 = arith.addf %20, %22 : vector<16x128xf32>
    %c0_22 = arith.constant 0 : index
    %c0_23 = arith.constant 0 : index
    %24 = vector.load %arg10[%c0_22, %c0_23] : memref<16x128xf32, #tpu.memory_space<vmem>>, vector<16x128xf32>
    tpu.vector_store %arg10[%c0_22, %c0_23], %23 {strides = array<i32>} : memref<16x128xf32, #tpu.memory_space<vmem>>, vector<16x128xf32>,
    return
  }
  func.func @transform_0(%arg0: i32) -> (i32, i32) {
    %c0_i32 = arith.constant 0 : i32
    %c0_i32_0 = arith.constant 0 : i32
    return %arg0, %c0_i32 : i32, i32
  }
  func.func @transform_1(%arg0: i32) -> (i32, i32) {
    %c0_i32 = arith.constant 0 : i32
    %c0_i32_0 = arith.constant 0 : i32
    return %arg0, %c0_i32 : i32, i32
  }
  func.func @transform_2(%arg0: i32) -> (i32, i32) {
    %c0_i32 = arith.constant 0 : i32
    %c0_i32_0 = arith.constant 0 : i32
    %c0_i32_1 = arith.constant 0 : i32
    return %c0_i32, %c0_i32_0 : i32, i32
  }
  func.func @transform_3(%arg0: i32) -> (i32, i32) {
    %c0_i32 = arith.constant 0 : i32
    %c0_i32_0 = arith.constant 0 : i32
    %c0_i32_1 = arith.constant 0 : i32
    return %c0_i32, %c0_i32_0 : i32, i32
  }
  func.func @transform_4(%arg0: i32) -> (i32, i32) {
    %c0_i32 = arith.constant 0 : i32
    %c0_i32_0 = arith.constant 0 : i32
    %c0_i32_1 = arith.constant 0 : i32
    return %c0_i32, %c0_i32_0 : i32, i32
  }
  func.func @transform_5(%arg0: i32) -> (i32, i32) {
    %c0_i32 = arith.constant 0 : i32
    %c0_i32_0 = arith.constant 0 : i32
    %c0_i32_1 = arith.constant 0 : i32
    return %c0_i32, %c0_i32_0 : i32, i32
  }
  func.func @transform_6(%arg0: i32) -> (i32, i32) {
    %c0_i32 = arith.constant 0 : i32
    %c0_i32_0 = arith.constant 0 : i32
    %c0_i32_1 = arith.constant 0 : i32
    return %c0_i32, %c0_i32_0 : i32, i32
  }
  func.func @transform_7(%arg0: i32) -> (i32, i32) {
    %c0_i32 = arith.constant 0 : i32
    %c0_i32_0 = arith.constant 0 : i32
    %c0_i32_1 = arith.constant 0 : i32
    return %c0_i32, %c0_i32_0 : i32, i32
  }
  func.func @transform_8(%arg0: i32) -> (i32, i32) {
    %c0_i32 = arith.constant 0 : i32
    %c0_i32_0 = arith.constant 0 : i32
    %c0_i32_1 = arith.constant 0 : i32
    return %c0_i32, %c0_i32_0 : i32, i32
  }
  func.func @transform_9(%arg0: i32) -> (i32, i32) {
    %c0_i32 = arith.constant 0 : i32
    %c0_i32_0 = arith.constant 0 : i32
    return %arg0, %c0_i32 : i32, i32
  }
}

</mosaic_0001>

<llo_original>
// kernel: tpu_custom_call.1
$region0: #{tpu_custom_call.1}
  #allocation0 [shape = 'u32[]', space=smem, size = 0x4, offset = 0x4, fixed_abs, tag = 'smem constant byte address 0x4 - core index']
  #allocation1 [shape = 'u32[144,128]{1,0:T(1,128)}', space=vmem, size = 0x12000, scoped, tag = 'internal scratch']
  %s0 = inlined_call_operand.hbm [shape: f32[16,128], index: 0, kind: input, shape index: {}]
  %s1 = inlined_call_operand.hbm [shape: f32[16,128], index: 1, kind: input, shape index: {}]
  %s2 = inlined_call_operand.hbm [shape: f32[128,128], index: 2, kind: input, shape index: {}]
  %s3 = inlined_call_operand.hbm [shape: f32[128,128], index: 3, kind: input, shape index: {}]
  %s4 = inlined_call_operand.vmem [shape: f32[1,128], index: 4, kind: input, shape index: {}]
  %s5 = inlined_call_operand.hbm [shape: f32[128,128], index: 5, kind: input, shape index: {}]
  %s6 = inlined_call_operand.vmem [shape: f32[1,128], index: 6, kind: input, shape index: {}]
  %s7 = inlined_call_operand.hbm [shape: f32[128,128], index: 7, kind: input, shape index: {}]
  %s8 = inlined_call_operand.vmem [shape: f32[1,128], index: 8, kind: input, shape index: {}]
  %s9 = inlined_call_operand.hbm [shape: f32[16,128], index: 9, kind: output, shape index: {}]
  %s10 = sld [smem:[#allocation0]]
  $region70: #{tpu_custom_call.1} parent=0
    _
  %s12 = ssub.s32 1, %s10
  %s13 = scalar_select 0, %s12, %s10
  $region1: #{tpu_custom_call.1} parent=0
    #allocation2 [shape = 'u8[8192]{0}', space=vmem, size = 0x2000, scoped, tag = 'input window, operand 0, single buffered']
    #allocation3 [shape = 's32[1]{0}', space=sflag, size = 0x4, scoped, tag = 'scoped memory for tpu_custom_call.1']
    #allocation4 [shape = 's32[1]{0}', space=sflag, size = 0x4, scoped, tag = 'scoped memory for tpu_custom_call.1']
    #allocation5 [shape = 'u8[8192]{0}', space=vmem, size = 0x2000, scoped, tag = 'input window, operand 1, single buffered']
    #allocation6 [shape = 's32[1]{0}', space=sflag, size = 0x4, scoped, tag = 'scoped memory for tpu_custom_call.1']
    #allocation7 [shape = 'u8[65536]{0}', space=vmem, size = 0x10000, scoped, tag = 'input window, operand 2, single buffered']
    #allocation8 [shape = 'u8[65536]{0}', space=vmem, size = 0x10000, scoped, tag = 'input window, operand 3, single buffered']
    #allocation9 [shape = 's32[1]{0}', space=sflag, size = 0x4, scoped, tag = 'scoped memory for tpu_custom_call.1']
    #allocation10 [shape = 'u8[65536]{0}', space=vmem, size = 0x10000, scoped, tag = 'input window, operand 5, single buffered']
    #allocation11 [shape = 'u8[65536]{0}', space=vmem, size = 0x10000, scoped, tag = 'input window, operand 7, single buffered']
    #allocation12 [shape = 's32[1]{0}', space=sflag, size = 0x4, scoped, tag = 'scoped memory for tpu_custom_call.1']
    #allocation13 [shape = 'u8[8192]{0}', space=vmem, size = 0x2000, scoped, tag = 'output window, operand 0, single buffered']
    %14 = vsyncpa [#allocation3], 0
    %15 = vsyncpa [#allocation6], 0
    %16 = vsyncpa [#allocation9], 0
    %17 = vsyncpa [#allocation12], 0
    %18 = vsyncpa [#allocation4], 0
    // Predicated region
    $region2: #{tpu_custom_call.1} parent=1 // pred_check
      _
    $region3: #{tpu_custom_call.1} parent=1 // pred_check_branch
      %20 = sbr.rel (0) target = $region5
    $region4: #{tpu_custom_call.1} parent=1 // pred_region
      %s22 = ssub.s32 256, 256
      %23 = vsyncadd [#allocation3], %s22
      %s24 = sshll.u32 [#allocation2], 4
      %s25 = int_to_ptr.vmem [resolvable:$true] %s24
      %30 = dma.hbm_to_vmem [thread:$0]  %s0, 256, %s25, [#allocation3], 128, 128, 8
    $region5: #{tpu_custom_call.1} parent=1 // pred_fallthru
      _
    // Predicated region
    $region6: #{tpu_custom_call.1} parent=1 // pred_check
      _
    $region7: #{tpu_custom_call.1} parent=1 // pred_check_branch
      %32 = sbr.rel (0) target = $region9
    $region8: #{tpu_custom_call.1} parent=1 // pred_region
      %s34 = ssub.s32 256, 256
      %35 = vsyncadd [#allocation6], %s34
      %s36 = sshll.u32 [#allocation5], 4
      %s37 = int_to_ptr.vmem [resolvable:$true] %s36
      %42 = dma.hbm_to_vmem [thread:$0]  %s1, 256, %s37, [#allocation6], 128, 128, 8
    $region9: #{tpu_custom_call.1} parent=1 // pred_fallthru
      _
    // Predicated region
    $region10: #{tpu_custom_call.1} parent=1 // pred_check
      _
    $region11: #{tpu_custom_call.1} parent=1 // pred_check_branch
      %44 = sbr.rel (0) target = $region13
    $region12: #{tpu_custom_call.1} parent=1 // pred_region
      %s46 = ssub.s32 2048, 2048
      %47 = vsyncadd [#allocation6], %s46
      %s48 = sshll.u32 [#allocation7], 4
      %s49 = int_to_ptr.vmem [resolvable:$true] %s48
      %54 = dma.hbm_to_vmem [thread:$0]  %s2, 2048, %s49, [#allocation6], 128, 128, 8
    $region13: #{tpu_custom_call.1} parent=1 // pred_fallthru
      _
    // Predicated region
    $region14: #{tpu_custom_call.1} parent=1 // pred_check
      _
    $region15: #{tpu_custom_call.1} parent=1 // pred_check_branch
      %56 = sbr.rel (0) target = $region17
    $region16: #{tpu_custom_call.1} parent=1 // pred_region
      %s58 = ssub.s32 2048, 2048
      %59 = vsyncadd [#allocation9], %s58
      %s60 = sshll.u32 [#allocation8], 4
      %s61 = int_to_ptr.vmem [resolvable:$true] %s60
      %66 = dma.hbm_to_vmem [thread:$0]  %s3, 2048, %s61, [#allocation9], 128, 128, 8
    $region17: #{tpu_custom_call.1} parent=1 // pred_fallthru
      _
    // Predicated region
    $region18: #{tpu_custom_call.1} parent=1 // pred_check
      _
    $region19: #{tpu_custom_call.1} parent=1 // pred_check_branch
      %68 = sbr.rel (0) target = $region21
    $region20: #{tpu_custom_call.1} parent=1 // pred_region
      _
    $region21: #{tpu_custom_call.1} parent=1 // pred_fallthru
      _
    // Predicated region
    $region22: #{tpu_custom_call.1} parent=1 // pred_check
      _
    $region23: #{tpu_custom_call.1} parent=1 // pred_check_branch
      %70 = sbr.rel (0) target = $region25
    $region24: #{tpu_custom_call.1} parent=1 // pred_region
      %s72 = ssub.s32 2048, 2048
      %73 = vsyncadd [#allocation9], %s72
      %s74 = sshll.u32 [#allocation10], 4
      %s75 = int_to_ptr.vmem [resolvable:$true] %s74
      %80 = dma.hbm_to_vmem [thread:$0]  %s5, 2048, %s75, [#allocation9], 128, 128, 8
    $region25: #{tpu_custom_call.1} parent=1 // pred_fallthru
      _
    // Predicated region
    $region26: #{tpu_custom_call.1} parent=1 // pred_check
      _
    $region27: #{tpu_custom_call.1} parent=1 // pred_check_branch
      %82 = sbr.rel (0) target = $region29
    $region28: #{tpu_custom_call.1} parent=1 // pred_region
      _
    $region29: #{tpu_custom_call.1} parent=1 // pred_fallthru
      _
    // Predicated region
    $region30: #{tpu_custom_call.1} parent=1 // pred_check
      _
    $region31: #{tpu_custom_call.1} parent=1 // pred_check_branch
      %84 = sbr.rel (0) target = $region33
    $region32: #{tpu_custom_call.1} parent=1 // pred_region
      %s86 = ssub.s32 2048, 2048
      %87 = vsyncadd [#allocation12], %s86
      %s88 = sshll.u32 [#allocation11], 4
      %s89 = int_to_ptr.vmem [resolvable:$true] %s88
      %94 = dma.hbm_to_vmem [thread:$0]  %s7, 2048, %s89, [#allocation12], 128, 128, 8
    $region33: #{tpu_custom_call.1} parent=1 // pred_fallthru
      _
    // Predicated region
    $region34: #{tpu_custom_call.1} parent=1 // pred_check
      _
    $region35: #{tpu_custom_call.1} parent=1 // pred_check_branch
      %96 = sbr.rel (0) target = $region37
    $region36: #{tpu_custom_call.1} parent=1 // pred_region
      _
    $region37: #{tpu_custom_call.1} parent=1 // pred_fallthru
      _
    // Predicated region
    $region38: #{tpu_custom_call.1} parent=1 // pred_check
      _
    $region39: #{tpu_custom_call.1} parent=1 // pred_check_branch
      %98 = sbr.rel (0) target = $region41
    $region40: #{tpu_custom_call.1} parent=1 // pred_region
      %99 = dma.done [#allocation3], 256
    $region41: #{tpu_custom_call.1} parent=1 // pred_fallthru
      _
    // Predicated region
    $region42: #{tpu_custom_call.1} parent=1 // pred_check
      _
    $region43: #{tpu_custom_call.1} parent=1 // pred_check_branch
      %101 = sbr.rel (0) target = $region45
    $region44: #{tpu_custom_call.1} parent=1 // pred_region
      %102 = dma.done [#allocation6], 256
    $region45: #{tpu_custom_call.1} parent=1 // pred_fallthru
      _
    // Predicated region
    $region46: #{tpu_custom_call.1} parent=1 // pred_check
      _
    $region47: #{tpu_custom_call.1} parent=1 // pred_check_branch
      %104 = sbr.rel (0) target = $region49
    $region48: #{tpu_custom_call.1} parent=1 // pred_region
      %105 = dma.done [#allocation6], 2048
    $region49: #{tpu_custom_call.1} parent=1 // pred_fallthru
      _
    // Predicated region
    $region50: #{tpu_custom_call.1} parent=1 // pred_check
      _
    $region51: #{tpu_custom_call.1} parent=1 // pred_check_branch
      %107 = sbr.rel (0) target = $region53
    $region52: #{tpu_custom_call.1} parent=1 // pred_region
      %108 = dma.done [#allocation9], 2048
    $region53: #{tpu_custom_call.1} parent=1 // pred_fallthru
      _
    // Predicated region
    $region54: #{tpu_custom_call.1} parent=1 // pred_check
      _
    $region55: #{tpu_custom_call.1} parent=1 // pred_check_branch
      %110 = sbr.rel (0) target = $region57
    $region56: #{tpu_custom_call.1} parent=1 // pred_region
      %111 = dma.done [#allocation9], 2048
    $region57: #{tpu_custom_call.1} parent=1 // pred_fallthru
      _
    // Predicated region
    $region58: #{tpu_custom_call.1} parent=1 // pred_check
      _
    $region59: #{tpu_custom_call.1} parent=1 // pred_check_branch
      %113 = sbr.rel (0) target = $region61
    $region60: #{tpu_custom_call.1} parent=1 // pred_region
      %114 = dma.done [#allocation12], 2048
    $region61: #{tpu_custom_call.1} parent=1 // pred_fallthru
      _
    %v115 = vld [vmem:[#allocation2] sm:$0xff]
    %v116 = vld [vmem:[#allocation2 + $0x8] sm:$0xff]
    %v117 = vld [vmem:[#allocation5] sm:$0xff]
    %v118 = vld [vmem:[#allocation5 + $0x8] sm:$0xff]
    %v119 = vld [vmem:[#allocation7] sm:$0xff]
    %v120 = vld [vmem:[#allocation7 + $0x8] sm:$0xff]
    %v121 = vld [vmem:[#allocation7 + $0x10] sm:$0xff]
    %v122 = vld [vmem:[#allocation7 + $0x18] sm:$0xff]
    %v123 = vld [vmem:[#allocation7 + $0x20] sm:$0xff]
    %v124 = vld [vmem:[#allocation7 + $0x28] sm:$0xff]
    %v125 = vld [vmem:[#allocation7 + $0x30] sm:$0xff]
    %v126 = vld [vmem:[#allocation7 + $0x38] sm:$0xff]
    %v127 = vld [vmem:[#allocation7 + $0x40] sm:$0xff]
    %v128 = vld [vmem:[#allocation7 + $0x48] sm:$0xff]
    %v129 = vld [vmem:[#allocation7 + $0x50] sm:$0xff]
    %v130 = vld [vmem:[#allocation7 + $0x58] sm:$0xff]
    %v131 = vld [vmem:[#allocation7 + $0x60] sm:$0xff]
    %v132 = vld [vmem:[#allocation7 + $0x68] sm:$0xff]
    %v133 = vld [vmem:[#allocation7 + $0x70] sm:$0xff]
    %v134 = vld [vmem:[#allocation7 + $0x78] sm:$0xff]
    %v135 = vld [vmem:[#allocation8] sm:$0xff]
    %v136 = vld [vmem:[#allocation8 + $0x8] sm:$0xff]
    %v137 = vld [vmem:[#allocation8 + $0x10] sm:$0xff]
    %v138 = vld [vmem:[#allocation8 + $0x18] sm:$0xff]
    %v139 = vld [vmem:[#allocation8 + $0x20] sm:$0xff]
    %v140 = vld [vmem:[#allocation8 + $0x28] sm:$0xff]
    %v141 = vld [vmem:[#allocation8 + $0x30] sm:$0xff]
    %v142 = vld [vmem:[#allocation8 + $0x38] sm:$0xff]
    %v143 = vld [vmem:[#allocation8 + $0x40] sm:$0xff]
    %v144 = vld [vmem:[#allocation8 + $0x48] sm:$0xff]
    %v145 = vld [vmem:[#allocation8 + $0x50] sm:$0xff]
    %v146 = vld [vmem:[#allocation8 + $0x58] sm:$0xff]
    %v147 = vld [vmem:[#allocation8 + $0x60] sm:$0xff]
    %v148 = vld [vmem:[#allocation8 + $0x68] sm:$0xff]
    %v149 = vld [vmem:[#allocation8 + $0x70] sm:$0xff]
    %v150 = vld [vmem:[#allocation8 + $0x78] sm:$0xff]
    %151 = vmatprep.subr.mxu0 0.0
    %152 = vmatpush1.msra.mxu0 %v135
    %153 = vmatprep.subr.mxu0 0.0
    %154 = vmatpush1.msra.mxu0 %v136
    %155 = vmatprep.subr.mxu0 0.0
    %156 = vmatpush1.msra.mxu0 %v137
    %157 = vmatprep.subr.mxu0 0.0
    %158 = vmatpush1.msra.mxu0 %v138
    %159 = vmatprep.subr.mxu0 0.0
    %160 = vmatpush1.msra.mxu0 %v139
    %161 = vmatprep.subr.mxu0 0.0
    %162 = vmatpush1.msra.mxu0 %v140
    %163 = vmatprep.subr.mxu0 0.0
    %164 = vmatpush1.msra.mxu0 %v141
    %165 = vmatprep.subr.mxu0 0.0
    %166 = vmatpush1.msra.mxu0 %v142
    %167 = vmatprep.subr.mxu0 0.0
    %168 = vmatpush1.msra.mxu0 %v143
    %169 = vmatprep.subr.mxu0 0.0
    %170 = vmatpush1.msra.mxu0 %v144
    %171 = vmatprep.subr.mxu0 0.0
    %172 = vmatpush1.msra.mxu0 %v145
    %173 = vmatprep.subr.mxu0 0.0
    %174 = vmatpush1.msra.mxu0 %v146
    %175 = vmatprep.subr.mxu0 0.0
    %176 = vmatpush1.msra.mxu0 %v147
    %177 = vmatprep.subr.mxu0 0.0
    %178 = vmatpush1.msra.mxu0 %v148
    %179 = vmatprep.subr.mxu0 0.0
    %180 = vmatpush1.msra.mxu0 %v149
    %181 = vmatprep.subr.mxu0 0.0
    %182 = vmatpush1.msra.mxu0 %v150
    %183 = vmatprep.subr.mxu0 0.0
    %184 = vmatpush1.msra.mxu0 0.0
    %185 = vmatprep.subr.mxu0 0.0
    %186 = vmatpush1.msra.mxu0 0.0
    %187 = vmatprep.subr.mxu0 0.0
    %188 = vmatpush1.msra.mxu0 0.0
    %189 = vmatprep.subr.mxu0 0.0
    %190 = vmatpush1.msra.mxu0 0.0
    %191 = vmatprep.subr.mxu0 0.0
    %192 = vmatpush1.msra.mxu0 0.0
    %193 = vmatprep.subr.mxu0 0.0
    %194 = vmatpush1.msra.mxu0 0.0
    %195 = vmatprep.subr.mxu0 0.0
    %196 = vmatpush1.msra.mxu0 0.0
    %197 = vmatprep.subr.mxu0 0.0
    %198 = vmatpush1.msra.mxu0 0.0
    %199 = vmatprep.subr.mxu0 0.0
    %200 = vmatpush1.msra.mxu0 0.0
    %201 = vmatprep.subr.mxu0 0.0
    %202 = vmatpush1.msra.mxu0 0.0
    %203 = vmatprep.subr.mxu0 0.0
    %204 = vmatpush1.msra.mxu0 0.0
    %205 = vmatprep.subr.mxu0 0.0
    %206 = vmatpush1.msra.mxu0 0.0
    %207 = vmatprep.subr.mxu0 0.0
    %208 = vmatpush1.msra.mxu0 0.0
    %209 = vmatprep.subr.mxu0 0.0
    %210 = vmatpush1.msra.mxu0 0.0
    %211 = vmatprep.subr.mxu0 0.0
    %212 = vmatpush1.msra.mxu0 0.0
    %213 = vmatprep.subr.mxu0 0.0
    %214 = vmatpush1.msra.mxu0 0.0
    %215 = vmatprep.mubr.f32.mxu0 0.0
    %216 = vmatmul.mubr.f32.gmra.mrb[0].mxu0 %v117
    %v217 = vpop.f32.mrb[0].mxu0
    %v218 = vadd.f32 0.0, %v217
    %v219 = vpop.f32.mrb[0].mxu0
    %220 = vmatprep.mubr.f32.mxu0 0.0
    %221 = vmatmul.mubr.f32.gmra.mrb[0].mxu0 %v118
    %v222 = vpop.f32.mrb[0].mxu0
    %v223 = vadd.f32 0.0, %v222
    %v224 = vpop.f32.mrb[0].mxu0
    %225 = vdwg.mxu0
    %226 = vmatprep.subr.mxu0 0.0
    %227 = vmatpush1.msra.mxu0 %v119
    %228 = vmatprep.subr.mxu0 0.0
    %229 = vmatpush1.msra.mxu0 %v120
    %230 = vmatprep.subr.mxu0 0.0
    %231 = vmatpush1.msra.mxu0 %v121
    %232 = vmatprep.subr.mxu0 0.0
    %233 = vmatpush1.msra.mxu0 %v122
    %234 = vmatprep.subr.mxu0 0.0
    %235 = vmatpush1.msra.mxu0 %v123
    %236 = vmatprep.subr.mxu0 0.0
    %237 = vmatpush1.msra.mxu0 %v124
    %238 = vmatprep.subr.mxu0 0.0
    %239 = vmatpush1.msra.mxu0 %v125
    %240 = vmatprep.subr.mxu0 0.0
    %241 = vmatpush1.msra.mxu0 %v126
    %242 = vmatprep.subr.mxu0 0.0
    %243 = vmatpush1.msra.mxu0 %v127
    %244 = vmatprep.subr.mxu0 0.0
    %245 = vmatpush1.msra.mxu0 %v128
    %246 = vmatprep.subr.mxu0 0.0
    %247 = vmatpush1.msra.mxu0 %v129
    %248 = vmatprep.subr.mxu0 0.0
    %249 = vmatpush1.msra.mxu0 %v130
    %250 = vmatprep.subr.mxu0 0.0
    %251 = vmatpush1.msra.mxu0 %v131
    %252 = vmatprep.subr.mxu0 0.0
    %253 = vmatpush1.msra.mxu0 %v132
    %254 = vmatprep.subr.mxu0 0.0
    %255 = vmatpush1.msra.mxu0 %v133
    %256 = vmatprep.subr.mxu0 0.0
    %257 = vmatpush1.msra.mxu0 %v134
    %258 = vmatprep.subr.mxu0 0.0
    %259 = vmatpush1.msra.mxu0 0.0
    %260 = vmatprep.subr.mxu0 0.0
    %261 = vmatpush1.msra.mxu0 0.0
    %262 = vmatprep.subr.mxu0 0.0
    %263 = vmatpush1.msra.mxu0 0.0
    %264 = vmatprep.subr.mxu0 0.0
    %265 = vmatpush1.msra.mxu0 0.0
    %266 = vmatprep.subr.mxu0 0.0
    %267 = vmatpush1.msra.mxu0 0.0
    %268 = vmatprep.subr.mxu0 0.0
    %269 = vmatpush1.msra.mxu0 0.0
    %270 = vmatprep.subr.mxu0 0.0
    %271 = vmatpush1.msra.mxu0 0.0
    %272 = vmatprep.subr.mxu0 0.0
    %273 = vmatpush1.msra.mxu0 0.0
    %274 = vmatprep.subr.mxu0 0.0
    %275 = vmatpush1.msra.mxu0 0.0
    %276 = vmatprep.subr.mxu0 0.0
    %277 = vmatpush1.msra.mxu0 0.0
    %278 = vmatprep.subr.mxu0 0.0
    %279 = vmatpush1.msra.mxu0 0.0
    %280 = vmatprep.subr.mxu0 0.0
    %281 = vmatpush1.msra.mxu0 0.0
    %282 = vmatprep.subr.mxu0 0.0
    %283 = vmatpush1.msra.mxu0 0.0
    %284 = vmatprep.subr.mxu0 0.0
    %285 = vmatpush1.msra.mxu0 0.0
    %286 = vmatprep.subr.mxu0 0.0
    %287 = vmatpush1.msra.mxu0 0.0
    %288 = vmatprep.subr.mxu0 0.0
    %289 = vmatpush1.msra.mxu0 0.0
    %290 = vmatprep.mubr.f32.mxu0 0.0
    %291 = vmatmul.mubr.f32.gmra.mrb[0].mxu0 %v115
    %v292 = vpop.f32.mrb[0].mxu0
    %v293 = vadd.f32 %v218, %v292
    %v294 = vpop.f32.mrb[0].mxu0
    %295 = vmatprep.mubr.f32.mxu0 0.0
    %296 = vmatmul.mubr.f32.gmra.mrb[0].mxu0 %v116
    %v297 = vpop.f32.mrb[0].mxu0
    %v298 = vadd.f32 %v223, %v297
    %v299 = vpop.f32.mrb[0].mxu0
    %300 = vdwg.mxu0
    %v301 = vld [vmem:[%s4] sm:$0x1]
    %v303 = vlaneseq
    %v304 = vshrl.u32 %v303, 7
    %v305 = vsub.s32 0, %v304
    %v306 = vrot.slane %v301, %v305
    %v308 = vadd.f32 %v293, %v306
    %v309 = vadd.f32 %v298, %v306
    %v310 = vmax.f32 %v308, 0.0
    %v311 = vmax.f32 %v309, 0.0
    %v312 = vld [vmem:[#allocation10] sm:$0xff]
    %v313 = vld [vmem:[#allocation10 + $0x8] sm:$0xff]
    %v314 = vld [vmem:[#allocation10 + $0x10] sm:$0xff]
    %v315 = vld [vmem:[#allocation10 + $0x18] sm:$0xff]
    %v316 = vld [vmem:[#allocation10 + $0x20] sm:$0xff]
    %v317 = vld [vmem:[#allocation10 + $0x28] sm:$0xff]
    %v318 = vld [vmem:[#allocation10 + $0x30] sm:$0xff]
    %v319 = vld [vmem:[#allocation10 + $0x38] sm:$0xff]
    %v320 = vld [vmem:[#allocation10 + $0x40] sm:$0xff]
    %v321 = vld [vmem:[#allocation10 + $0x48] sm:$0xff]
    %v322 = vld [vmem:[#allocation10 + $0x50] sm:$0xff]
    %v323 = vld [vmem:[#allocation10 + $0x58] sm:$0xff]
    %v324 = vld [vmem:[#allocation10 + $0x60] sm:$0xff]
    %v325 = vld [vmem:[#allocation10 + $0x68] sm:$0xff]
    %v326 = vld [vmem:[#allocation10 + $0x70] sm:$0xff]
    %v327 = vld [vmem:[#allocation10 + $0x78] sm:$0xff]
    %v328 = vld [vmem:[%s6] sm:$0x1]
    %v330 = vlaneseq
    %v331 = vshrl.u32 %v330, 7
    %v332 = vsub.s32 0, %v331
    %v333 = vrot.slane %v328, %v332
    %335 = vmatprep.subr.mxu0 0.0
    %336 = vmatpush1.msra.mxu0 %v312
    %337 = vmatprep.subr.mxu0 0.0
    %338 = vmatpush1.msra.mxu0 %v313
    %339 = vmatprep.subr.mxu0 0.0
    %340 = vmatpush1.msra.mxu0 %v314
    %341 = vmatprep.subr.mxu0 0.0
    %342 = vmatpush1.msra.mxu0 %v315
    %343 = vmatprep.subr.mxu0 0.0
    %344 = vmatpush1.msra.mxu0 %v316
    %345 = vmatprep.subr.mxu0 0.0
    %346 = vmatpush1.msra.mxu0 %v317
    %347 = vmatprep.subr.mxu0 0.0
    %348 = vmatpush1.msra.mxu0 %v318
    %349 = vmatprep.subr.mxu0 0.0
    %350 = vmatpush1.msra.mxu0 %v319
    %351 = vmatprep.subr.mxu0 0.0
    %352 = vmatpush1.msra.mxu0 %v320
    %353 = vmatprep.subr.mxu0 0.0
    %354 = vmatpush1.msra.mxu0 %v321
    %355 = vmatprep.subr.mxu0 0.0
    %356 = vmatpush1.msra.mxu0 %v322
    %357 = vmatprep.subr.mxu0 0.0
    %358 = vmatpush1.msra.mxu0 %v323
    %359 = vmatprep.subr.mxu0 0.0
    %360 = vmatpush1.msra.mxu0 %v324
    %361 = vmatprep.subr.mxu0 0.0
    %362 = vmatpush1.msra.mxu0 %v325
    %363 = vmatprep.subr.mxu0 0.0
    %364 = vmatpush1.msra.mxu0 %v326
    %365 = vmatprep.subr.mxu0 0.0
    %366 = vmatpush1.msra.mxu0 %v327
    %367 = vmatprep.subr.mxu0 0.0
    %368 = vmatpush1.msra.mxu0 0.0
    %369 = vmatprep.subr.mxu0 0.0
    %370 = vmatpush1.msra.mxu0 0.0
    %371 = vmatprep.subr.mxu0 0.0
    %372 = vmatpush1.msra.mxu0 0.0
    %373 = vmatprep.subr.mxu0 0.0
    %374 = vmatpush1.msra.mxu0 0.0
    %375 = vmatprep.subr.mxu0 0.0
    %376 = vmatpush1.msra.mxu0 0.0
    %377 = vmatprep.subr.mxu0 0.0
    %378 = vmatpush1.msra.mxu0 0.0
    %379 = vmatprep.subr.mxu0 0.0
    %380 = vmatpush1.msra.mxu0 0.0
    %381 = vmatprep.subr.mxu0 0.0
    %382 = vmatpush1.msra.mxu0 0.0
    %383 = vmatprep.subr.mxu0 0.0
    %384 = vmatpush1.msra.mxu0 0.0
    %385 = vmatprep.subr.mxu0 0.0
    %386 = vmatpush1.msra.mxu0 0.0
    %387 = vmatprep.subr.mxu0 0.0
    %388 = vmatpush1.msra.mxu0 0.0
    %389 = vmatprep.subr.mxu0 0.0
    %390 = vmatpush1.msra.mxu0 0.0
    %391 = vmatprep.subr.mxu0 0.0
    %392 = vmatpush1.msra.mxu0 0.0
    %393 = vmatprep.subr.mxu0 0.0
    %394 = vmatpush1.msra.mxu0 0.0
    %395 = vmatprep.subr.mxu0 0.0
    %396 = vmatpush1.msra.mxu0 0.0
    %397 = vmatprep.subr.mxu0 0.0
    %398 = vmatpush1.msra.mxu0 0.0
    %399 = vmatprep.mubr.f32.mxu0 0.0
    %400 = vmatmul.mubr.f32.gmra.mrb[0].mxu0 %v310
    %v401 = vpop.f32.mrb[0].mxu0
    %v402 = vadd.f32 %v333, %v401
    %v403 = vpop.f32.mrb[0].mxu0
    %404 = vmatprep.mubr.f32.mxu0 0.0
    %405 = vmatmul.mubr.f32.gmra.mrb[0].mxu0 %v311
    %v406 = vpop.f32.mrb[0].mxu0
    %v407 = vadd.f32 %v333, %v406
    %v408 = vpop.f32.mrb[0].mxu0
    %409 = vdwg.mxu0
    %v410 = vmax.f32 %v402, 0.0
    %v411 = vmax.f32 %v407, 0.0
    %v412 = vld [vmem:[#allocation11] sm:$0xff]
    %v413 = vld [vmem:[#allocation11 + $0x8] sm:$0xff]
    %v414 = vld [vmem:[#allocation11 + $0x10] sm:$0xff]
    %v415 = vld [vmem:[#allocation11 + $0x18] sm:$0xff]
    %v416 = vld [vmem:[#allocation11 + $0x20] sm:$0xff]
    %v417 = vld [vmem:[#allocation11 + $0x28] sm:$0xff]
    %v418 = vld [vmem:[#allocation11 + $0x30] sm:$0xff]
    %v419 = vld [vmem:[#allocation11 + $0x38] sm:$0xff]
    %v420 = vld [vmem:[#allocation11 + $0x40] sm:$0xff]
    %v421 = vld [vmem:[#allocation11 + $0x48] sm:$0xff]
    %v422 = vld [vmem:[#allocation11 + $0x50] sm:$0xff]
    %v423 = vld [vmem:[#allocation11 + $0x58] sm:$0xff]
    %v424 = vld [vmem:[#allocation11 + $0x60] sm:$0xff]
    %v425 = vld [vmem:[#allocation11 + $0x68] sm:$0xff]
    %v426 = vld [vmem:[#allocation11 + $0x70] sm:$0xff]
    %v427 = vld [vmem:[#allocation11 + $0x78] sm:$0xff]
    %v428 = vld [vmem:[%s8] sm:$0x1]
    %v430 = vlaneseq
    %v431 = vshrl.u32 %v430, 7
    %v432 = vsub.s32 0, %v431
    %v433 = vrot.slane %v428, %v432
    %435 = vmatprep.subr.mxu0 0.0
    %436 = vmatpush1.msra.mxu0 %v412
    %437 = vmatprep.subr.mxu0 0.0
    %438 = vmatpush1.msra.mxu0 %v413
    %439 = vmatprep.subr.mxu0 0.0
    %440 = vmatpush1.msra.mxu0 %v414
    %441 = vmatprep.subr.mxu0 0.0
    %442 = vmatpush1.msra.mxu0 %v415
    %443 = vmatprep.subr.mxu0 0.0
    %444 = vmatpush1.msra.mxu0 %v416
    %445 = vmatprep.subr.mxu0 0.0
    %446 = vmatpush1.msra.mxu0 %v417
    %447 = vmatprep.subr.mxu0 0.0
    %448 = vmatpush1.msra.mxu0 %v418
    %449 = vmatprep.subr.mxu0 0.0
    %450 = vmatpush1.msra.mxu0 %v419
    %451 = vmatprep.subr.mxu0 0.0
    %452 = vmatpush1.msra.mxu0 %v420
    %453 = vmatprep.subr.mxu0 0.0
    %454 = vmatpush1.msra.mxu0 %v421
    %455 = vmatprep.subr.mxu0 0.0
    %456 = vmatpush1.msra.mxu0 %v422
    %457 = vmatprep.subr.mxu0 0.0
    %458 = vmatpush1.msra.mxu0 %v423
    %459 = vmatprep.subr.mxu0 0.0
    %460 = vmatpush1.msra.mxu0 %v424
    %461 = vmatprep.subr.mxu0 0.0
    %462 = vmatpush1.msra.mxu0 %v425
    %463 = vmatprep.subr.mxu0 0.0
    %464 = vmatpush1.msra.mxu0 %v426
    %465 = vmatprep.subr.mxu0 0.0
    %466 = vmatpush1.msra.mxu0 %v427
    %467 = vmatprep.subr.mxu0 0.0
    %468 = vmatpush1.msra.mxu0 0.0
    %469 = vmatprep.subr.mxu0 0.0
    %470 = vmatpush1.msra.mxu0 0.0
    %471 = vmatprep.subr.mxu0 0.0
    %472 = vmatpush1.msra.mxu0 0.0
    %473 = vmatprep.subr.mxu0 0.0
    %474 = vmatpush1.msra.mxu0 0.0
    %475 = vmatprep.subr.mxu0 0.0
    %476 = vmatpush1.msra.mxu0 0.0
    %477 = vmatprep.subr.mxu0 0.0
    %478 = vmatpush1.msra.mxu0 0.0
    %479 = vmatprep.subr.mxu0 0.0
    %480 = vmatpush1.msra.mxu0 0.0
    %481 = vmatprep.subr.mxu0 0.0
    %482 = vmatpush1.msra.mxu0 0.0
    %483 = vmatprep.subr.mxu0 0.0
    %484 = vmatpush1.msra.mxu0 0.0
    %485 = vmatprep.subr.mxu0 0.0
    %486 = vmatpush1.msra.mxu0 0.0
    %487 = vmatprep.subr.mxu0 0.0
    %488 = vmatpush1.msra.mxu0 0.0
    %489 = vmatprep.subr.mxu0 0.0
    %490 = vmatpush1.msra.mxu0 0.0
    %491 = vmatprep.subr.mxu0 0.0
    %492 = vmatpush1.msra.mxu0 0.0
    %493 = vmatprep.subr.mxu0 0.0
    %494 = vmatpush1.msra.mxu0 0.0
    %495 = vmatprep.subr.mxu0 0.0
    %496 = vmatpush1.msra.mxu0 0.0
    %497 = vmatprep.subr.mxu0 0.0
    %498 = vmatpush1.msra.mxu0 0.0
    %499 = vmatprep.mubr.f32.mxu0 0.0
    %500 = vmatmul.mubr.f32.gmra.mrb[0].mxu0 %v410
    %v501 = vpop.f32.mrb[0].mxu0
    %v502 = vadd.f32 %v433, %v501
    %v503 = vpop.f32.mrb[0].mxu0
    %504 = vmatprep.mubr.f32.mxu0 0.0
    %505 = vmatmul.mubr.f32.gmra.mrb[0].mxu0 %v411
    %v506 = vpop.f32.mrb[0].mxu0
    %v507 = vadd.f32 %v433, %v506
    %v508 = vpop.f32.mrb[0].mxu0
    %509 = vdwg.mxu0
    %510 = vst [vmem:[#allocation13] sm:$0xff] %v502
    %511 = vst [vmem:[#allocation13 + $0x8] sm:$0xff] %v507
    // Predicated region
    $region62: #{tpu_custom_call.1} parent=1 // pred_check
      _
    $region63: #{tpu_custom_call.1} parent=1 // pred_check_branch
      %513 = sbr.rel (0) target = $region65
    $region64: #{tpu_custom_call.1} parent=1 // pred_region
      %s515 = ssub.s32 256, 256
      %516 = vsyncadd [#allocation4], %s515
      %s517 = sshll.u32 [#allocation13], 4
      %s518 = int_to_ptr.vmem [resolvable:$true] %s517
      %523 = dma.vmem_to_hbm [thread:$0]  %s518, 256, %s9, [#allocation4], 128, 128, 8
    $region65: #{tpu_custom_call.1} parent=1 // pred_fallthru
      _
    // Predicated region
    $region66: #{tpu_custom_call.1} parent=1 // pred_check
      _
    $region67: #{tpu_custom_call.1} parent=1 // pred_check_branch
      %525 = sbr.rel (0) target = $region69
    $region68: #{tpu_custom_call.1} parent=1 // pred_region
      %526 = dma.done [#allocation4], 256
    $region69: #{tpu_custom_call.1} parent=1 // pred_fallthru
      _
    %527 = vsyncpa [#allocation3], 1
    %528 = vsyncpa [#allocation6], 1
    %529 = vsyncpa [#allocation9], 1
    %530 = vsyncpa [#allocation12], 1
    %531 = vsyncpa [#allocation4], 1

</llo_original>
